<compile_context>
chip_gen: v5e
topology: v5e:2x2
jax: 0.10.0
libtpu: 0.0.40
codegen_flags: <defaults>
</compile_context>

<pallas_src>
import functools

import jax
import jax.numpy as jnp
from jax.experimental import pallas as pl
from jax.experimental.pallas import tpu as pltpu


MAX_CHUNK = 8192                        # upper bound on rows gathered per grid step
_MXU_ONEHOT_BYTES = 2 * 1024 * 1024     # budget for the one-hot intermediate (MXU path)


def _round_up(x, m):
    return ((x + m - 1) // m) * m


def _vmem_capacity_bytes():
    """Physical VMEM per TensorCore (128 MiB on v5e/v6e, 64 MiB on v7x)."""
    try:
        info = pltpu.get_tpu_info()
        cap = int(getattr(info, "vmem_capacity_bytes", 0) or 0)
        if cap >= 16 * 1024 * 1024:
            return cap
    except Exception:
        pass
    return 64 * 1024 * 1024             # conservative fallback (true for v7x)


_VMEM_CAP = _vmem_capacity_bytes()
_VMEM_LIMIT = _VMEM_CAP * 3 // 4        # requested scoped-VMEM limit (~96 MiB v5e/v6e, ~48 MiB v7x)
_VMEM_BUDGET = _VMEM_CAP * 3 // 5       # what table + per-step buffers may consume


def _table_vmem_bytes(n_bio, n_factors, itemsize):
    # Whole-array VMEM operand: SINGLE buffer, (8,128)-tile padded.
    return _round_up(n_bio, 8) * _round_up(n_factors, 128) * itemsize


def _choose_chunk(n_bio, n_factors, itemsize):
    """Largest per-step row count that fits the VMEM budget (0 => table doesn't fit)."""
    avail = _VMEM_BUDGET - _table_vmem_bytes(n_bio, n_factors, itemsize)
    # Per gathered row: double-buffered output block (lane-padded to 128), one
    # gather intermediate, and the double-buffered int32 index.
    per_row = 3 * _round_up(n_factors, 128) * itemsize + 2 * 4
    if avail < 128 * per_row:
        return 0
    return int(min(MAX_CHUNK, (avail // per_row) // 128 * 128))


def _emb_gather_kernel(idx_ref, emb_ref, out_ref, *, use_mxu):
    """Gather one chunk of embedding rows.

    idx_ref : VMEM (rows, 1) int32 (MXU path) or (rows,) int32 (take path)
    emb_ref : VMEM (n_bio, n_factors)  -- full table, single-buffered
    out_ref : VMEM (rows, n_factors)
    """
    emb = emb_ref[...]
    if use_mxu:
        # Small tables: one-hot matmul keeps the gather on the (otherwise idle)
        # MXU instead of the scarce XLU.  idx arrives as a sublane-major column
        # vector, so the broadcast against the 2-D iota needs no relayout.
        # Out-of-range indices (only reachable from padded/ragged-edge rows,
        # which Pallas masks on store) simply produce zero rows.
        rows = idx_ref.shape[0]
        n_bio = emb_ref.shape[0]
        cols = jax.lax.broadcasted_iota(jnp.int32, (rows, n_bio), 1)
        onehot = (idx_ref[...] == cols).astype(emb.dtype)
        out = jnp.dot(onehot, emb, preferred_element_type=jnp.float32)
        out_ref[...] = out.astype(out_ref.dtype)
    else:
        # Vectorized XLU gather; mode="clip" keeps stray padded-tail indices
        # in-bounds (VMEM reads have no runtime OOB check).
        out_ref[...] = jnp.take(emb, idx_ref[...], axis=0, mode="clip").astype(out_ref.dtype)


def _pallas_gather(flat_idx, emb_weight, chunk):
    n = flat_idx.shape[0]
    n_bio, n_factors = emb_weight.shape
    itemsize = jnp.dtype(emb_weight.dtype).itemsize

    if n <= chunk:
        # Single grid step with full-array blocks: no padding, no post-slice.
        grid = (1,)
        rows = n
        idx_in = flat_idx
    else:
        grid = (pl.cdiv(n, chunk),)
        rows = chunk
        n_pad = grid[0] * chunk
        # Only the cheap int32 index vector is padded; the output stays
        # unpadded and Pallas masks the ragged edge block on store.
        idx_in = jnp.pad(flat_idx, (0, n_pad - n)) if n_pad != n else flat_idx

    # MXU one-hot path only while the one-hot intermediate stays small.
    use_mxu = rows * _round_up(n_bio, 128) * itemsize <= _MXU_ONEHOT_BYTES

    if use_mxu:
        idx_in = idx_in.reshape(-1, 1)                      # column-vector layout
        idx_spec = pl.BlockSpec((rows, 1), lambda i: (i, 0))
    else:
        idx_spec = pl.BlockSpec((rows,), lambda i: (i,))

    return pl.pallas_call(
        functools.partial(_emb_gather_kernel, use_mxu=use_mxu),
        out_shape=jax.ShapeDtypeStruct((n, n_factors), emb_weight.dtype),
        grid=grid,
        in_specs=[
            # Per-step chunk of indices (double-buffered, tiny).
            idx_spec,
            # Whole table resident in VMEM: one copy, single buffer.
            pl.BlockSpec(memory_space=pltpu.MemorySpace.VMEM),
        ],
        out_specs=pl.BlockSpec((rows, n_factors), lambda i: (i, 0)),
        compiler_params=pltpu.CompilerParams(
            # Disjoint output tiles per step -> shardable across v7x's 2 TCs.
            dimension_semantics=("parallel",),
            vmem_limit_bytes=_VMEM_LIMIT,
        ),
    )(idx_in, emb_weight)


@functools.partial(jax.jit, static_argnames=("use_pallas",))
def matrix_factorization_forward(idxs, emb_weight, use_pallas=None):
    """Equivalent of MatrixFactorization.forward(idxs)."""
    n_bio, n_factors = emb_weight.shape
    out_shape = tuple(idxs.shape) + (n_factors,)

    flat_idx = idxs.reshape(-1).astype(jnp.int32)
    n = flat_idx.shape[0]
    itemsize = jnp.dtype(emb_weight.dtype).itemsize

    chunk = _choose_chunk(n_bio, n_factors, itemsize)
    fits_vmem = chunk > 0

    if use_pallas is None:
        # Tiny lookups: pallas_call launch overhead dwarfs the bytes moved, and
        # XLA's fused gather is already optimal there.
        use_pallas = fits_vmem and n >= 1024

    if not (use_pallas and fits_vmem and n > 0):
        # TODO(synk): tables too large for the VMEM budget should use an
        # HBM-resident DMA gather (PrefetchScalarGridSpec indices in SMEM +
        # batched make_async_copy, double-buffered) -- matters most on v7x.
        safe = jnp.clip(flat_idx, 0, n_bio - 1)
        return jnp.take(emb_weight, safe, axis=0).reshape(out_shape)

    out = _pallas_gather(flat_idx, emb_weight, chunk)
    return out.reshape(out_shape)


if __name__ == "__main__":
    # Small, deterministic setup consistent with the module defaults.
    n_bio = 64
    n_factors = 20          # module default n_factors=20
    batch, seq = 2, 8       # idxs shape (2, 8)

    key = jax.random.PRNGKey(0)
    k_emb, k1, k2, k3 = jax.random.split(key, 4)

    # nn.Embedding default init: weight ~ N(0, 1)
    emb_weight = jax.random.normal(k_emb, (n_bio, n_factors), dtype=jnp.float32)

    # Case 1: module-sized input (2, 8) -> single grid step, MXU one-hot path.
    idxs = jax.random.randint(k1, (batch, seq), 0, n_bio, dtype=jnp.int32)
    out = jax.block_until_ready(
        matrix_factorization_forward(idxs, emb_weight, use_pallas=True))
    assert out.shape == (batch, seq, n_factors), out.shape
    assert jnp.allclose(out, emb_weight[idxs]), "mismatch vs reference (small / MXU path)"

    # Case 2: mid-size input, still a single grid step, no padding at all.
    idxs2 = jax.random.randint(k2, (4, 300), 0, n_bio, dtype=jnp.int32)
    out2 = jax.block_until_ready(
        matrix_factorization_forward(idxs2, emb_weight, use_pallas=True))
    assert out2.shape == (4, 300, n_factors), out2.shape
    assert jnp.allclose(out2, emb_weight[idxs2]), "mismatch vs reference (mid / MXU path)"

    # Case 3: large input -> multi-chunk grid with a ragged (masked) edge block,
    # vectorized jnp.take path, unpadded output (no post-slice copy).
    idxs3 = jax.random.randint(k3, (3, 3000), 0, n_bio, dtype=jnp.int32)
    out3 = jax.block_until_ready(
        matrix_factorization_forward(idxs3, emb_weight, use_pallas=True))
    assert out3.shape == (3, 3000, n_factors), out3.shape
    assert jnp.allclose(out3, emb_weight[idxs3]), "mismatch vs reference (chunked / take path)"

    print("KERNEL_OK")
</pallas_src>

<mosaic_0001>
module attributes {stable_mosaic.version = 11 : i64} {
  func.func @_emb_gather_kernel(%arg0: i32, %arg1: memref<16x1xi32, #tpu.memory_space<vmem>>, %arg2: memref<64x20xf32, #tpu.memory_space<vmem>>, %arg3: memref<16x20xf32, #tpu.memory_space<vmem>>) attributes {dimension_semantics = [#tpu.dimension_semantics<parallel>], iteration_bounds = array<i64: 1>, scalar_prefetch = 0 : i64, scratch_operands = 0 : i64, tpu.core_type = #tpu.core_type<tc>, window_params = [{transform_indices = @transform_0, window_bounds = array<i64: 16, 1>}, {pipeline_mode = #tpu.pipeline_mode<synchronous>, transform_indices = @transform_1, window_bounds = array<i64: 64, 20>}, {transform_indices = @transform_2, window_bounds = array<i64: 16, 20>}]} {
    %c0 = arith.constant 0 : index
    %c0_0 = arith.constant 0 : index
    %0 = vector.load %arg2[%c0, %c0_0] : memref<64x20xf32, #tpu.memory_space<vmem>>, vector<64x20xf32>
    %1 = tpu.iota {dimensions = array<i32: 1>} : vector<16x64xi32>
    %c0_1 = arith.constant 0 : index
    %c0_2 = arith.constant 0 : index
    %2 = vector.load %arg1[%c0_1, %c0_2] : memref<16x1xi32, #tpu.memory_space<vmem>>, vector<16x1xi32>
    %3 = vector.broadcast %2 : vector<16x1xi32> to vector<16x64xi32>
    %4 = arith.cmpi eq, %3, %1 : vector<16x64xi32>
    %5 = arith.extui %4 : vector<16x64xi1> to vector<16x64xi32>
    %6 = arith.sitofp %5 : vector<16x64xi32> to vector<16x64xf32>
    %cst = arith.constant dense<0.000000e+00> : vector<16x20xf32>
    %7 = tpu.matmul %6, %0, %cst {dimension_numbers = #tpu.dot_dimension_numbers<[1], [0], [0], [1], [0, 0, 1, 1], [], []>} : vector<16x64xf32>, vector<64x20xf32>, vector<16x20xf32> -> vector<16x20xf32>
    %c0_3 = arith.constant 0 : index
    %c0_4 = arith.constant 0 : index
    %8 = vector.load %arg3[%c0_3, %c0_4] : memref<16x20xf32, #tpu.memory_space<vmem>>, vector<16x20xf32>
    tpu.vector_store %arg3[%c0_3, %c0_4], %7 {strides = array<i32>} : memref<16x20xf32, #tpu.memory_space<vmem>>, vector<16x20xf32>,
    return
  }
  func.func @transform_0(%arg0: i32) -> (i32, i32) {
    %c0_i32 = arith.constant 0 : i32
    %c0_i32_0 = arith.constant 0 : i32
    return %arg0, %c0_i32 : i32, i32
  }
  func.func @transform_1(%arg0: i32) -> (i32, i32) {
    %c0_i32 = arith.constant 0 : i32
    %c0_i32_0 = arith.constant 0 : i32
    %c0_i32_1 = arith.constant 0 : i32
    return %c0_i32, %c0_i32_0 : i32, i32
  }
  func.func @transform_2(%arg0: i32) -> (i32, i32) {
    %c0_i32 = arith.constant 0 : i32
    %c0_i32_0 = arith.constant 0 : i32
    return %arg0, %c0_i32 : i32, i32
  }
}

</mosaic_0001>

<llo_original>
// kernel: matrix_factorization_forward.1
$region0: #{matrix_factorization_forward.1}
  #allocation0 [shape = 'u32[]', space=smem, size = 0x4, offset = 0x4, fixed_abs, tag = 'smem constant byte address 0x4 - core index']
  #allocation1 [shape = 'u32[72,128]{1,0:T(1,128)}', space=vmem, size = 0x9000, scoped, tag = 'internal scratch']
  %s0 = inlined_call_operand.vmem [shape: s32[16,1], index: 0, kind: input, shape index: {}]
  %s1 = inlined_call_operand.vmem [shape: f32[64,20], index: 1, kind: input, shape index: {}]
  %s2 = inlined_call_operand.hbm [shape: f32[16,20], index: 2, kind: output, shape index: {}]
  %s3 = sld [smem:[#allocation0]]
  $region18: #{matrix_factorization_forward.1} parent=0
    _
  %s5 = ssub.s32 1, %s3
  %s6 = scalar_select 0, %s5, %s3
  $region1: #{matrix_factorization_forward.1} parent=0
    #allocation2 [shape = 'u8[8192]{0}', space=vmem, size = 0x2000, scoped, tag = 'output window, operand 0, single buffered']
    #allocation3 [shape = 's32[1]{0}', space=sflag, size = 0x4, scoped, tag = 'scoped memory for matrix_factorization_forward.1']
    %7 = vsyncpa [#allocation3], 0
    // Predicated region
    $region2: #{matrix_factorization_forward.1} parent=1 // pred_check
      _
    $region3: #{matrix_factorization_forward.1} parent=1 // pred_check_branch
      %9 = sbr.rel (0) target = $region5
    $region4: #{matrix_factorization_forward.1} parent=1 // pred_region
      _
    $region5: #{matrix_factorization_forward.1} parent=1 // pred_fallthru
      _
    // Predicated region
    $region6: #{matrix_factorization_forward.1} parent=1 // pred_check
      _
    $region7: #{matrix_factorization_forward.1} parent=1 // pred_check_branch
      %11 = sbr.rel (0) target = $region9
    $region8: #{matrix_factorization_forward.1} parent=1 // pred_region
      _
    $region9: #{matrix_factorization_forward.1} parent=1 // pred_fallthru
      _
    %v12 = vld [vmem:[%s1] sm:$0xff]
    %v13 = vld [vmem:[%s1 + $0x8] sm:$0xff]
    %v14 = vld [vmem:[%s1 + $0x10] sm:$0xff]
    %v15 = vld [vmem:[%s1 + $0x18] sm:$0xff]
    %v16 = vld [vmem:[%s1 + $0x20] sm:$0xff]
    %v17 = vld [vmem:[%s1 + $0x28] sm:$0xff]
    %v18 = vld [vmem:[%s1 + $0x30] sm:$0xff]
    %v19 = vld [vmem:[%s1 + $0x38] sm:$0xff]
    %v20 = vlaneseq
    %v21 = vand.u32 %v20, 127
    %v22 = vld [vmem:[%s0] sm:$0xff]
    %v23 = vld [vmem:[%s0 + $0x8] sm:$0xff]
    %24 = vset.pattern.permute.xlu0 0
    %25 = vperm.xlu0 %24, %v22
    %v26 = vpop.permute.xlu0 %25
    %27 = vset.pattern.permute.xlu0 0
    %28 = vperm.xlu0 %27, %v23
    %v29 = vpop.permute.xlu0 %28
    %vm30 = vcmp.eq.s32.totalorder %v26, %v21
    %vm31 = vcmp.eq.s32.totalorder %v29, %v21
    %v32 = vsel %vm30, 1, 0
    %v33 = vsel %vm31, 1, 0
    %v34 = vcvt.s32.f32 %v32
    %v35 = vcvt.s32.f32 %v33
    %vm36 = vcmask 523264
    %v38 = vsel %vm36, %v34, 0
    %v41 = vsel %vm36, %v35, 0
    %43 = vmatpush.msra.mxu0 0.0
    %44 = vmatpush.msra.mxu0 0.0
    %45 = vmatpush.msra.mxu0 0.0
    %46 = vmatpush.msra.mxu0 0.0
    %47 = vmatpush.msra.mxu0 0.0
    %48 = vmatpush.msra.mxu0 0.0
    %49 = vmatpush.msra.mxu0 0.0
    %50 = vmatpush.msra.mxu0 0.0
    %51 = vmatpush.msra.mxu0 %v19
    %52 = vmatpush.msra.mxu0 %v18
    %53 = vmatpush.msra.mxu0 %v17
    %54 = vmatpush.msra.mxu0 %v16
    %55 = vmatpush.msra.mxu0 %v15
    %56 = vmatpush.msra.mxu0 %v14
    %57 = vmatpush.msra.mxu0 %v13
    %58 = vmatpush.msra.mxu0 %v12
    %59 = vmatmul.f32.gmra.mxu0 %v38
    %v60 = vpop.f32.mrf.mxu0
    %v61 = vadd.f32 0.0, %v60
    %62 = vmatmul.f32.gmra.mxu0 %v41
    %v63 = vpop.f32.mrf.mxu0
    %v64 = vadd.f32 0.0, %v63
    %65 = vdwg.mxu0
    %vm66 = vcmask 162816
    %67 = vst.msk [vmem:[#allocation2] sm:$0xff] %vm66, %v61
    %68 = vst.msk [vmem:[#allocation2 + $0x8] sm:$0xff] %vm66, %v64
    // Predicated region
    $region10: #{matrix_factorization_forward.1} parent=1 // pred_check
      _
    $region11: #{matrix_factorization_forward.1} parent=1 // pred_check_branch
      %70 = sbr.rel (0) target = $region13
    $region12: #{matrix_factorization_forward.1} parent=1 // pred_region
      %72 = vsyncadd [#allocation3], 0
      %s73 = sshll.u32 [#allocation2], 4
      %s74 = int_to_ptr.vmem [resolvable:$true] %s73
      %s75 = sshll.u32 %s2, 4
      %s76 = int_to_ptr.hbm [resolvable:$true] %s75
      %81 = dma.vmem_to_hbm [thread:$0]  %s74, 256, %s76, [#allocation3], 128, 128, 8
    $region13: #{matrix_factorization_forward.1} parent=1 // pred_fallthru
      _
    // Predicated region
    $region14: #{matrix_factorization_forward.1} parent=1 // pred_check
      _
    $region15: #{matrix_factorization_forward.1} parent=1 // pred_check_branch
      %83 = sbr.rel (0) target = $region17
    $region16: #{matrix_factorization_forward.1} parent=1 // pred_region
      %85 = dma.done [#allocation3], 256
    $region17: #{matrix_factorization_forward.1} parent=1 // pred_fallthru
      _
    %86 = vsyncpa [#allocation3], 1

</llo_original>
